<compile_context>
chip_gen: v7x
topology: tpu7x:2x2x1
jax: 0.10.0
libtpu: 0.0.40
codegen_flags: <defaults>
</compile_context>

<pallas_src>
import functools

import jax
import jax.numpy as jnp
from jax.experimental import pallas as pl
from jax.experimental.pallas import tpu as pltpu


def _pool_vx_kernel(x_ref, o_ref, *, kv, inv_scale):
    """Reduce the V-window and X-window of one natural-layout tile.

    x_ref: (TM, kv, Xp, kx*Y*Z)   input tile (natural memory order)
    o_ref: (TM, Xp, Y*Z)          partial result = mean over the (kv, kx) window
    """
    def load(d):
        v = x_ref[:, d]                       # (TM, Xp, kx*Y*Z), streamed from VMEM
        return v if v.dtype == jnp.float32 else v.astype(jnp.float32)

    # V-window: kv slices along a leading (non-tiled) dim -> plain vector adds.
    s = load(0)
    for d in range(1, kv):
        s = s + load(d)

    # X-window: the two kx offsets are two contiguous halves of the lane axis.
    half = s.shape[-1] // 2
    s = s[..., :half] + s[..., half:]

    o_ref[...] = (s * inv_scale).astype(o_ref.dtype)


def _round_up(a, b):
    return (a + b - 1) // b * b


def mixed_pooling_avg_pool(x, kernel_size_spa=(2, 2, 2), stride=None,
                           kernel_size_sph=4):
    """Forward pass of MixedPoolingAvgPool.

    Args:
      x: [B, Fin, V, X, Y, Z]
    Returns:
      (pooled [B, Fin, Vp, Xp, Yp, Zp], indices_spa, indices_sph)
    """
    if stride is None:
        stride = kernel_size_spa
    if tuple(stride) != tuple(kernel_size_spa):
        # TODO(synk): overlapping-window avg_pool3d (stride != kernel) not implemented.
        raise NotImplementedError("only stride == kernel_size_spa supported")

    B, Fin, V, X, Y, Z = x.shape
    kv = kernel_size_sph
    kx, ky, kz = kernel_size_spa
    Vp, Xp, Yp, Zp = V // kv, X // kx, Y // ky, Z // kz
    Yc, Zc = Yp * ky, Zp * kz

    # Floor truncation matches F.avg_pool{3d,1d} with no padding (no-op if exact).
    xc = x[:, :, :Vp * kv, :Xp * kx, :Yc, :Zc]

    # Pure reshape (view, no data movement): expose the V-window as a leading dim
    # and fold the X-window into the contiguous lane axis kx*Yc*Zc.
    M = B * Fin * Vp
    CH = kx * Yc * Zc
    xv = xc.reshape(M, kv, Xp, CH)

    itemsize = x.dtype.itemsize

    # Block sizing: target ~4 MiB of (VMEM-padded) input per grid step, and keep at
    # least 2 grid steps when possible so the parallel axis can shard across cores.
    pad_in_row = kv * _round_up(Xp, 8) * _round_up(CH, 128) * itemsize
    pad_out_row = _round_up(Xp, 8) * _round_up(Yc * Zc, 128) * itemsize
    target_bytes = 4 * 1024 * 1024
    TM = max(1, min(M, target_bytes // max(pad_in_row + pad_out_row, 1)))
    if M > 1:
        TM = min(TM, pl.cdiv(M, 2))
    grid_m = pl.cdiv(M, TM)

    # Double-buffered in/out blocks + slack; v5e's scoped-VMEM default is only 16 MiB.
    vmem_limit = int(min(64 * 1024 * 1024,
                         max(32 * 1024 * 1024,
                             4 * TM * (pad_in_row + pad_out_row))))

    kernel = functools.partial(_pool_vx_kernel, kv=kv, inv_scale=1.0 / (kv * kx))
    flops = int(xv.size)                                   # ~1 add per input element
    bytes_accessed = int((xv.size + M * Xp * Yc * Zc) * itemsize)

    partial = pl.pallas_call(
        kernel,
        out_shape=jax.ShapeDtypeStruct((M, Xp, Yc * Zc), x.dtype),
        grid_spec=pltpu.PrefetchScalarGridSpec(
            num_scalar_prefetch=0,
            grid=(grid_m,),
            in_specs=[pl.BlockSpec((TM, kv, Xp, CH), lambda i: (i, 0, 0, 0))],
            out_specs=pl.BlockSpec((TM, Xp, Yc * Zc), lambda i: (i, 0, 0)),
        ),
        compiler_params=pltpu.CompilerParams(
            dimension_semantics=("parallel",),
            vmem_limit_bytes=vmem_limit),
        cost_estimate=pl.CostEstimate(flops=flops, transcendentals=0,
                                      bytes_accessed=bytes_accessed),
    )(xv)

    # Residual (ky, kz) = 2x2 pooling on the 8x-smaller partial result: fused XLA
    # reduce over minor dims of the natural layout (no transpose, ~0.16x traffic).
    out = partial.reshape(B, Fin, Vp, Xp, Yp, ky, Zp, kz).mean(axis=(5, 7))
    out = out.astype(x.dtype)

    indices_spa = [0]
    indices_sph = [0]
    return out, indices_spa, indices_sph


if __name__ == "__main__":
    key = jax.random.PRNGKey(0)
    B, Fin, V, X, Y, Z = 2, 4, 8, 4, 4, 4
    x = jax.random.normal(key, (B, Fin, V, X, Y, Z), dtype=jnp.float32)

    out, idx_spa, idx_sph = mixed_pooling_avg_pool(x)
    out = jax.block_until_ready(out)

    # Independent reference: mean over the fused 4x2x2x2 pooling window.
    ref = x.reshape(B, Fin, V // 4, 4, X // 2, 2, Y // 2, 2, Z // 2, 2)
    ref = ref.mean(axis=(3, 5, 7, 9))

    assert out.shape == (B, Fin, V // 4, X // 2, Y // 2, Z // 2)
    assert jnp.allclose(out, ref, atol=1e-5, rtol=1e-5)
    assert idx_spa == [0] and idx_sph == [0]

    print("KERNEL_OK")
</pallas_src>

<mosaic_0001>
module attributes {stable_mosaic.version = 11 : i64} {
  func.func @_pool_vx_kernel(%arg0: i32, %arg1: memref<8x4x2x32xf32, #tpu.memory_space<vmem>>, %arg2: memref<8x2x16xf32, #tpu.memory_space<vmem>>) attributes {dimension_semantics = [#tpu.dimension_semantics<parallel>], iteration_bounds = array<i64: 2>, scalar_prefetch = 0 : i64, scratch_operands = 0 : i64, tpu.core_type = #tpu.core_type<tc>, window_params = [{transform_indices = @transform_0, window_bounds = array<i64: 8, 4, 2, 32>}, {transform_indices = @transform_1, window_bounds = array<i64: 8, 2, 16>}]} {
    %c0 = arith.constant 0 : index
    %c0_0 = arith.constant 0 : index
    %c0_1 = arith.constant 0 : index
    %c0_2 = arith.constant 0 : index
    %0 = vector.load %arg1[%c0, %c0_0, %c0_1, %c0_2] : memref<8x4x2x32xf32, #tpu.memory_space<vmem>>, vector<8x1x2x32xf32>
    %1 = vector.shape_cast %0 : vector<8x1x2x32xf32> to vector<8x2x32xf32>
    %c0_3 = arith.constant 0 : index
    %c1 = arith.constant 1 : index
    %c0_4 = arith.constant 0 : index
    %c0_5 = arith.constant 0 : index
    %2 = vector.load %arg1[%c0_3, %c1, %c0_4, %c0_5] : memref<8x4x2x32xf32, #tpu.memory_space<vmem>>, vector<8x1x2x32xf32>
    %3 = vector.shape_cast %2 : vector<8x1x2x32xf32> to vector<8x2x32xf32>
    %4 = arith.addf %1, %3 : vector<8x2x32xf32>
    %c0_6 = arith.constant 0 : index
    %c2 = arith.constant 2 : index
    %c0_7 = arith.constant 0 : index
    %c0_8 = arith.constant 0 : index
    %5 = vector.load %arg1[%c0_6, %c2, %c0_7, %c0_8] : memref<8x4x2x32xf32, #tpu.memory_space<vmem>>, vector<8x1x2x32xf32>
    %6 = vector.shape_cast %5 : vector<8x1x2x32xf32> to vector<8x2x32xf32>
    %7 = arith.addf %4, %6 : vector<8x2x32xf32>
    %c0_9 = arith.constant 0 : index
    %c3 = arith.constant 3 : index
    %c0_10 = arith.constant 0 : index
    %c0_11 = arith.constant 0 : index
    %8 = vector.load %arg1[%c0_9, %c3, %c0_10, %c0_11] : memref<8x4x2x32xf32, #tpu.memory_space<vmem>>, vector<8x1x2x32xf32>
    %9 = vector.shape_cast %8 : vector<8x1x2x32xf32> to vector<8x2x32xf32>
    %10 = arith.addf %7, %9 : vector<8x2x32xf32>
    %11 = vector.extract_strided_slice %10 {offsets = [0, 0, 0], sizes = [8, 2, 16], strides = [1, 1, 1]} : vector<8x2x32xf32> to vector<8x2x16xf32>
    %12 = vector.extract_strided_slice %10 {offsets = [0, 0, 16], sizes = [8, 2, 16], strides = [1, 1, 1]} : vector<8x2x32xf32> to vector<8x2x16xf32>
    %13 = arith.addf %11, %12 : vector<8x2x16xf32>
    %cst = arith.constant 1.250000e-01 : f32
    %14 = vector.broadcast %cst : f32 to vector<8x2x16xf32>
    %15 = arith.mulf %13, %14 : vector<8x2x16xf32>
    %c0_12 = arith.constant 0 : index
    %c0_13 = arith.constant 0 : index
    %c0_14 = arith.constant 0 : index
    %16 = vector.load %arg2[%c0_12, %c0_13, %c0_14] : memref<8x2x16xf32, #tpu.memory_space<vmem>>, vector<8x2x16xf32>
    tpu.vector_store %arg2[%c0_12, %c0_13, %c0_14], %15 {strides = array<i32>} : memref<8x2x16xf32, #tpu.memory_space<vmem>>, vector<8x2x16xf32>,
    return
  }
  func.func @transform_0(%arg0: i32) -> (i32, i32, i32, i32) {
    %c0_i32 = arith.constant 0 : i32
    %c0_i32_0 = arith.constant 0 : i32
    %c0_i32_1 = arith.constant 0 : i32
    %c0_i32_2 = arith.constant 0 : i32
    return %arg0, %c0_i32, %c0_i32_0, %c0_i32_1 : i32, i32, i32, i32
  }
  func.func @transform_1(%arg0: i32) -> (i32, i32, i32) {
    %c0_i32 = arith.constant 0 : i32
    %c0_i32_0 = arith.constant 0 : i32
    %c0_i32_1 = arith.constant 0 : i32
    return %arg0, %c0_i32, %c0_i32_0 : i32, i32, i32
  }
}

</mosaic_0001>

<llo_original>
// kernel: tpu_custom_call.1
$region0: #{tpu_custom_call.1}
  #allocation0 [shape = 'u32[]', space=smem, size = 0x4, offset = 0x4, fixed_abs, tag = 'smem constant byte address 0x4 - core index']
  #allocation1 [shape = 'u32[144,128]{1,0:T(1,128)}', space=vmem, size = 0x12000, scoped, tag = 'internal scratch']
  %s0 = inlined_call_operand.hbm [shape: f32[16,4,2,32], index: 0, kind: input, shape index: {}]
  %s1 = inlined_call_operand.hbm [shape: f32[16,2,16], index: 1, kind: output, shape index: {}]
  %s2 = sld [smem:[#allocation0]]
  $region41: #{tpu_custom_call.1} parent=0
    _
  %s4 = ssub.s32 1, %s2
  %s5 = scalar_select 0, %s4, %s2
  $region1: #{tpu_custom_call.1} parent=0
    #allocation2 [shape = 'u8[65536]{0}', space=vmem, size = 0x10000, scoped, tag = 'input window, operand 0']
    #allocation3 [shape = 's32[2]{0}', space=sflag, size = 0x8, scoped, tag = 'scoped memory for tpu_custom_call.1']
    #allocation4 [shape = 's32[2]{0}', space=sflag, size = 0x8, scoped, tag = 'scoped memory for tpu_custom_call.1']
    #allocation5 [shape = 'u8[16384]{0}', space=vmem, size = 0x4000, scoped, tag = 'output window, operand 0']
    %6 = vsyncpa [#allocation3], 0
    %s7 = scalar_lea.sflag [#allocation3], 1
    %8 = vsyncpa %s7, 0
    %9 = vsyncpa [#allocation4], 0
    %s10 = scalar_lea.sflag [#allocation4], 1
    %11 = vsyncpa %s10, 0
    loop: start=0, step=1, limit=4
    $region2: #{tpu_custom_call.1} parent=1 // loop_pre_header
      _
    $region3: #{tpu_custom_call.1} parent=1 // loop_header
      %s13 = sphi 0, %s17
      %p14 = scmp.ge.s32.totalorder %s13, 4
      %s23 = sphi 0, %s25
      %s26 = sphi 0, %s23
      %s27 = sphi 0, %s26
      %s43 = sphi 0, %s27
      %s49 = sphi 0, %s51
      %s52 = sphi 0, %s49
      %s53 = sphi 0, %s52
      %s69 = sphi 0, %s53
    $region4: #{tpu_custom_call.1} parent=1 // loop_header_branch
      %16 = sbr.rel (%p14) target = $region8
    $region5: #{tpu_custom_call.1} parent=1 // loop_body
      %s18 = ssub.s32 %s13, 1
      %s19 = ssub.s32 %s13, 2
      %s20 = sadd.s32 %s13, 1
      %s21 = ssub.s32 %s13, %s20
      %p22 = scmp.eq.s32.totalorder %s21, 0
      %s24 = sadd.s32 %s23, 1
      %s25 = scalar_select %p22, %s23, %s24
      %p28 = pneg %p22
      %p29 = scmp.eq.s32.totalorder %s13, 1
      %p30 = por %p28, %p29
      %p31 = scmp.ne.s32.totalorder %s23, %s26
      %p32 = scmp.eq.s32.totalorder %s13, 0
      %p33 = por %p31, %p32
      %p34 = scmp.ne.s32.totalorder %s23, %s26
      %p35 = scmp.eq.s32.totalorder %s18, 1
      %p36 = por %p34, %p35
      %p37 = scmp.ne.s32.totalorder %s26, %s27
      %p38 = scmp.eq.s32.totalorder %s18, 0
      %p39 = por %p37, %p38
      %p40 = scmp.ne.s32.totalorder %s26, %s27
      %p41 = scmp.eq.s32.totalorder %s19, 1
      %p42 = por %p40, %p41
      %p44 = scmp.ne.s32.totalorder %s27, %s43
      %p45 = scmp.eq.s32.totalorder %s19, 0
      %p46 = por %p44, %p45
      %s47 = ssub.s32 %s13, %s20
      %p48 = scmp.eq.s32.totalorder %s47, 0
      %s50 = sadd.s32 %s49, 1
      %s51 = scalar_select %p48, %s49, %s50
      %p54 = pneg %p48
      %p55 = scmp.eq.s32.totalorder %s13, 1
      %p56 = por %p54, %p55
      %p57 = scmp.ne.s32.totalorder %s49, %s52
      %p58 = scmp.eq.s32.totalorder %s13, 0
      %p59 = por %p57, %p58
      %p60 = scmp.ne.s32.totalorder %s49, %s52
      %p61 = scmp.eq.s32.totalorder %s18, 1
      %p62 = por %p60, %p61
      %p63 = scmp.ne.s32.totalorder %s52, %s53
      %p64 = scmp.eq.s32.totalorder %s18, 0
      %p65 = por %p63, %p64
      %p66 = scmp.ne.s32.totalorder %s52, %s53
      %p67 = scmp.eq.s32.totalorder %s19, 1
      %p68 = por %p66, %p67
      %p70 = scmp.ne.s32.totalorder %s53, %s69
      %p71 = scmp.eq.s32.totalorder %s19, 0
      %p72 = por %p70, %p71
      %p73 = scmp.le.s32.totalorder 1, %s13
      %p74 = scmp.lt.s32.totalorder %s13, 3
      %p75 = pnand %p73, %p74
      %p76 = pneg %p75
      // Predicated region
      $region9: #{tpu_custom_call.1} parent=5 // pred_check
        _
      $region10: #{tpu_custom_call.1} parent=5 // pred_check_branch
        %78 = sbr.rel (%p75) target = $region12
      $region11: #{tpu_custom_call.1} parent=5 // pred_region
        %s79 = ssub.s32 %s13, 1
      $region12: #{tpu_custom_call.1} parent=5 // pred_fallthru
        _
      %p80 = scmp.lt.s32.totalorder %s13, 2
      // Predicated region
      $region13: #{tpu_custom_call.1} parent=5 // pred_check
        %p81 = pneg %p80
      $region14: #{tpu_custom_call.1} parent=5 // pred_check_branch
        %83 = sbr.rel (%p81) target = $region16
      $region15: #{tpu_custom_call.1} parent=5 // pred_region
        // Predicated region
        $region17: #{tpu_custom_call.1} parent=15 // pred_check
          %p84 = pneg %p33
        $region18: #{tpu_custom_call.1} parent=15 // pred_check_branch
          %86 = sbr.rel (%p84) target = $region20
        $region19: #{tpu_custom_call.1} parent=15 // pred_region
          %s87 = sand.u32 %s23, 1
          %s88 = scalar_lea.sflag [#allocation3], %s87
          %s89 = sand.u32 %s23, 1
          %s90 = smul.addr %s89, 64
          %s91 = scalar_lea.vmem [#allocation2], %s90
          %s92 = smul.u32 8, %s13
          %s94 = ssub.s32 1024, 1024
          %95 = vsyncadd %s88, %s94
          %s96 = smul.addr %s92, 4
          %s97 = smul.addr %s96, 32
          %s98 = scalar_lea.hbm %s0, %s97
          %s99 = sshll.u32 %s91, 4
          %s100 = int_to_ptr.vmem [resolvable:$true] %s99
          %105 = dma.hbm_to_vmem [thread:$0]  %s98, 1024, %s100, %s88, 32, 32, 2
        $region20: #{tpu_custom_call.1} parent=15 // pred_fallthru
          _
      $region16: #{tpu_custom_call.1} parent=5 // pred_fallthru
        _
      %p106 = scmp.le.s32.totalorder 1, %s13
      %p107 = scmp.lt.s32.totalorder %s13, 3
      %p108 = pnand %p106, %p107
      %p109 = pneg %p108
      // Predicated region
      $region21: #{tpu_custom_call.1} parent=5 // pred_check
        _
      $region22: #{tpu_custom_call.1} parent=5 // pred_check_branch
        %111 = sbr.rel (%p108) target = $region24
      $region23: #{tpu_custom_call.1} parent=5 // pred_region
        %s112 = ssub.s32 %s13, 1
        %s113 = sand.u32 %s26, 1
        %s114 = scalar_lea.sflag [#allocation3], %s113
        %s115 = sand.u32 %s26, 1
        %s116 = smul.addr %s115, 64
        %s117 = scalar_lea.vmem [#allocation2], %s116
        // Predicated region
        $region25: #{tpu_custom_call.1} parent=23 // pred_check
          %p118 = pneg %p39
        $region26: #{tpu_custom_call.1} parent=23 // pred_check_branch
          %120 = sbr.rel (%p118) target = $region28
        $region27: #{tpu_custom_call.1} parent=23 // pred_region
          %121 = dma.done %s114, 1024
        $region28: #{tpu_custom_call.1} parent=23 // pred_fallthru
          _
        %s122 = sand.u32 %s26, 1
        %s123 = scalar_lea.sflag [#allocation3], %s122
        %s124 = sand.u32 %s26, 1
        %s125 = smul.addr %s124, 64
        %s126 = scalar_lea.vmem [#allocation2], %s125
        %p127 = pneg %p39
        %p128 = pneg %p36
        %p129 = pneg %p65
        %p130 = pneg %p62
        %s131 = sand.u32 %s52, 1
        %s132 = scalar_lea.sflag [#allocation4], %s131
        %s133 = sand.u32 %s52, 1
        %s134 = smul.addr %s133, 16
        %s135 = scalar_lea.vmem [#allocation5], %s134
        %s136 = smul.u32 8, %s18
        %s137 = smul.u32 8, %s18
        %v138 = vld [vmem:[%s117] sm:$0x3]
        %v139 = vld [vmem:[%s117 + $0x8] sm:$0x3]
        %v140 = vld [vmem:[%s117 + $0x10] sm:$0x3]
        %v141 = vld [vmem:[%s117 + $0x18] sm:$0x3]
        %v142 = vld [vmem:[%s117 + $0x20] sm:$0x3]
        %v143 = vld [vmem:[%s117 + $0x28] sm:$0x3]
        %v144 = vld [vmem:[%s117 + $0x30] sm:$0x3]
        %v145 = vld [vmem:[%s117 + $0x38] sm:$0x3]
        %s146 = scalar_lea.vmem %s117, 2 [#allocation2]
        %v147 = vld [vmem:[%s146] sm:$0x3]
        %v148 = vld [vmem:[%s146 + $0x8] sm:$0x3]
        %v149 = vld [vmem:[%s146 + $0x10] sm:$0x3]
        %v150 = vld [vmem:[%s146 + $0x18] sm:$0x3]
        %v151 = vld [vmem:[%s146 + $0x20] sm:$0x3]
        %v152 = vld [vmem:[%s146 + $0x28] sm:$0x3]
        %v153 = vld [vmem:[%s146 + $0x30] sm:$0x3]
        %v154 = vld [vmem:[%s146 + $0x38] sm:$0x3]
        %v155 = vadd.f32 %v138, %v147
        %v156 = vadd.f32 %v139, %v148
        %v157 = vadd.f32 %v140, %v149
        %v158 = vadd.f32 %v141, %v150
        %v159 = vadd.f32 %v142, %v151
        %v160 = vadd.f32 %v143, %v152
        %v161 = vadd.f32 %v144, %v153
        %v162 = vadd.f32 %v145, %v154
        %s163 = scalar_lea.vmem %s117, 4 [#allocation2]
        %v164 = vld [vmem:[%s163] sm:$0x3]
        %v165 = vld [vmem:[%s163 + $0x8] sm:$0x3]
        %v166 = vld [vmem:[%s163 + $0x10] sm:$0x3]
        %v167 = vld [vmem:[%s163 + $0x18] sm:$0x3]
        %v168 = vld [vmem:[%s163 + $0x20] sm:$0x3]
        %v169 = vld [vmem:[%s163 + $0x28] sm:$0x3]
        %v170 = vld [vmem:[%s163 + $0x30] sm:$0x3]
        %v171 = vld [vmem:[%s163 + $0x38] sm:$0x3]
        %v172 = vadd.f32 %v155, %v164
        %v173 = vadd.f32 %v156, %v165
        %v174 = vadd.f32 %v157, %v166
        %v175 = vadd.f32 %v158, %v167
        %v176 = vadd.f32 %v159, %v168
        %v177 = vadd.f32 %v160, %v169
        %v178 = vadd.f32 %v161, %v170
        %v179 = vadd.f32 %v162, %v171
        %s180 = scalar_lea.vmem %s117, 6 [#allocation2]
        %v181 = vld [vmem:[%s180] sm:$0x3]
        %v182 = vld [vmem:[%s180 + $0x8] sm:$0x3]
        %v183 = vld [vmem:[%s180 + $0x10] sm:$0x3]
        %v184 = vld [vmem:[%s180 + $0x18] sm:$0x3]
        %v185 = vld [vmem:[%s180 + $0x20] sm:$0x3]
        %v186 = vld [vmem:[%s180 + $0x28] sm:$0x3]
        %v187 = vld [vmem:[%s180 + $0x30] sm:$0x3]
        %v188 = vld [vmem:[%s180 + $0x38] sm:$0x3]
        %v189 = vadd.f32 %v172, %v181
        %v190 = vadd.f32 %v173, %v182
        %v191 = vadd.f32 %v174, %v183
        %v192 = vadd.f32 %v175, %v184
        %v193 = vadd.f32 %v176, %v185
        %v194 = vadd.f32 %v177, %v186
        %v195 = vadd.f32 %v178, %v187
        %v196 = vadd.f32 %v179, %v188
        %205 = vrot.lane.b32.xlu0 %v189, 112
        %v206 = vpop.permute.xlu0 %205
        %207 = vrot.lane.b32.xlu0 %v190, 112
        %v208 = vpop.permute.xlu0 %207
        %209 = vrot.lane.b32.xlu0 %v191, 112
        %v210 = vpop.permute.xlu0 %209
        %211 = vrot.lane.b32.xlu0 %v192, 112
        %v212 = vpop.permute.xlu0 %211
        %213 = vrot.lane.b32.xlu0 %v193, 112
        %v214 = vpop.permute.xlu0 %213
        %215 = vrot.lane.b32.xlu0 %v194, 112
        %v216 = vpop.permute.xlu0 %215
        %217 = vrot.lane.b32.xlu0 %v195, 112
        %v218 = vpop.permute.xlu0 %217
        %219 = vrot.lane.b32.xlu0 %v196, 112
        %v220 = vpop.permute.xlu0 %219
        %v229 = vadd.f32 %v189, %v206
        %v230 = vadd.f32 %v190, %v208
        %v231 = vadd.f32 %v191, %v210
        %v232 = vadd.f32 %v192, %v212
        %v233 = vadd.f32 %v193, %v214
        %v234 = vadd.f32 %v194, %v216
        %v235 = vadd.f32 %v195, %v218
        %v236 = vadd.f32 %v196, %v220
        %v237 = vmul.f32 %v229, 0.125
        %v238 = vmul.f32 %v230, 0.125
        %v239 = vmul.f32 %v231, 0.125
        %v240 = vmul.f32 %v232, 0.125
        %v241 = vmul.f32 %v233, 0.125
        %v242 = vmul.f32 %v234, 0.125
        %v243 = vmul.f32 %v235, 0.125
        %v244 = vmul.f32 %v236, 0.125
        %vm245 = vcmask 123904
        %246 = vst.msk [vmem:[%s135] sm:$0x3] %vm245, %v237
        %247 = vst.msk [vmem:[%s135 + $0x2] sm:$0x3] %vm245, %v238
        %248 = vst.msk [vmem:[%s135 + $0x4] sm:$0x3] %vm245, %v239
        %249 = vst.msk [vmem:[%s135 + $0x6] sm:$0x3] %vm245, %v240
        %250 = vst.msk [vmem:[%s135 + $0x8] sm:$0x3] %vm245, %v241
        %251 = vst.msk [vmem:[%s135 + $0xa] sm:$0x3] %vm245, %v242
        %252 = vst.msk [vmem:[%s135 + $0xc] sm:$0x3] %vm245, %v243
        %253 = vst.msk [vmem:[%s135 + $0xe] sm:$0x3] %vm245, %v244
        %s254 = sand.u32 %s52, 1
        %s255 = scalar_lea.sflag [#allocation4], %s254
        %s256 = sand.u32 %s52, 1
        %s257 = smul.addr %s256, 16
        %s258 = scalar_lea.vmem [#allocation5], %s257
        // Predicated region
        $region29: #{tpu_custom_call.1} parent=23 // pred_check
          %p259 = pneg %p62
        $region30: #{tpu_custom_call.1} parent=23 // pred_check_branch
          %261 = sbr.rel (%p259) target = $region32
        $region31: #{tpu_custom_call.1} parent=23 // pred_region
          %s262 = smul.u32 8, %s18
          %s264 = ssub.s32 256, 256
          %265 = vsyncadd %s255, %s264
          %s266 = smul.addr %s262, 32
          %s267 = scalar_lea.hbm %s1, %s266
          %s268 = sshll.u32 %s258, 4
          %s269 = int_to_ptr.vmem [resolvable:$true] %s268
          %274 = dma.vmem_to_hbm [thread:$0]  %s269, 256, %s267, %s255, 32, 32, 2
        $region32: #{tpu_custom_call.1} parent=23 // pred_fallthru
          _
      $region24: #{tpu_custom_call.1} parent=5 // pred_fallthru
        _
      %p275 = scmp.le.s32.totalorder 2, %s13
      // Predicated region
      $region33: #{tpu_custom_call.1} parent=5 // pred_check
        %p276 = pneg %p275
      $region34: #{tpu_custom_call.1} parent=5 // pred_check_branch
        %278 = sbr.rel (%p276) target = $region36
      $region35: #{tpu_custom_call.1} parent=5 // pred_region
        %s279 = ssub.s32 %s13, 2
        // Predicated region
        $region37: #{tpu_custom_call.1} parent=35 // pred_check
          %p280 = pneg %p68
        $region38: #{tpu_custom_call.1} parent=35 // pred_check_branch
          %282 = sbr.rel (%p280) target = $region40
        $region39: #{tpu_custom_call.1} parent=35 // pred_region
          %s283 = sand.u32 %s53, 1
          %s284 = scalar_lea.sflag [#allocation4], %s283
          %s285 = sand.u32 %s53, 1
          %s286 = smul.addr %s285, 16
          %s287 = scalar_lea.vmem [#allocation5], %s286
          %288 = dma.done %s284, 256
        $region40: #{tpu_custom_call.1} parent=35 // pred_fallthru
          _
      $region36: #{tpu_custom_call.1} parent=5 // pred_fallthru
        _
    $region6: #{tpu_custom_call.1} parent=1 // loop_footer
      %s17 = sadd.s32 1, %s13
    $region7: #{tpu_custom_call.1} parent=1 // loop_footer_branch
      %12 = sbr.rel target = $region3
    $region8: #{tpu_custom_call.1} parent=1 // loop_exit
      _
    %289 = vsyncpa [#allocation3], 1
    %s290 = scalar_lea.sflag [#allocation3], 1
    %291 = vsyncpa %s290, 1
    %292 = vsyncpa [#allocation4], 1
    %s293 = scalar_lea.sflag [#allocation4], 1
    %294 = vsyncpa %s293, 1

</llo_original>
